<compile_context>
chip_gen: v7x
topology: tpu7x:2x2x1
jax: 0.10.0
libtpu: 0.0.40
codegen_flags: <defaults>
</compile_context>

<pallas_src>
import math

import jax
import jax.numpy as jnp
from jax.experimental import pallas as pl
from jax.experimental.pallas import tpu as pltpu


def _final_layer_kernel(coeff_ref, b_ref, x_ref, yw_ref, t_ref, o_ref):
    # Blocks (per grid step (b, mi, ni)):
    #   coeff_ref: (C, 1, 1)   f32   -0.5 / exp(sigma)^2           (VMEM, batch-independent)
    #   b_ref    : (1,)        f32   linear bias                    (SMEM scalar)
    #   x_ref    : (1, TN, 1)  f32   context inputs (column)
    #   yw_ref   : (1, 1, K)   bf16  W-folded context outputs, K = C*TN, lane-dense row
    #   t_ref    : (1, 1, TM)  f32   target inputs (lane-dense row)
    #   o_ref    : (1, 1, TM)  f32   output row; resident fp32 accumulator across the N grid axis
    ni = pl.program_id(2)

    @pl.when(ni == 0)
    def _init():
        o_ref[...] = jnp.zeros_like(o_ref)

    x = x_ref[0]                                    # (TN, 1)
    tr = t_ref[0]                                   # (1, TM)
    d = (x - tr) ** 2                               # (TN, TM) pairwise squared distances (VPU)

    coeff = coeff_ref[...]                          # (C, 1, 1)
    e = jnp.exp(coeff * d[None, :, :])              # (C, TN, TM) RBF weights (EUP-bound, fp32)
    c, tn, tm = e.shape
    e_flat = e.reshape(c * tn, tm)                  # leading-dim merge; layout-free since TN % 8 == 0

    yw = yw_ref[0]                                  # (1, K) bf16, weight already folded in
    part = jnp.dot(yw, e_flat.astype(jnp.bfloat16),
                   preferred_element_type=jnp.float32)   # single fused-K MXU dot -> (1, TM)
    o_ref[0] += part

    @pl.when(ni == pl.num_programs(2) - 1)
    def _finalize():
        o_ref[...] = o_ref[...] + b_ref[0]


def _round_up(v, m):
    return ((v + m - 1) // m) * m


def _pick_tile(extent, cap):
    t = 128
    while 2 * t <= cap and t < _round_up(extent, 128):
        t *= 2
    return t


def final_layer_forward(x, y, t, sigma, g_weight, g_bias, *, tile_m=512, tile_n=512):
    """x: (B, N, 1), y: (B, N, C), t: (B, M, 1)  ->  (B, M, 1)."""
    B, N, _ = x.shape
    C = y.shape[2]
    M = t.shape[1]
    f32 = jnp.float32

    # ---- parameter prep (glue): sigma_fn = exp; fold Linear weight into y ----
    scales = jnp.exp(sigma.astype(f32))
    coeff = (-0.5 / (scales ** 2)).reshape(C, 1, 1)            # per-channel RBF coefficient
    w = g_weight.reshape(1, 1, C).astype(f32)                  # Linear(C, 1) weight
    b = g_bias.reshape(1).astype(f32)

    # ---- tile sizing: lane-dense (multiples of 128), VMEM-bounded (sized for v7x) ----
    TM = _pick_tile(M, tile_m)
    tn_cap = max(128, min(tile_n, (4096 // C) // 128 * 128))   # bound K = C*TN
    TN = _pick_tile(N, tn_cap)
    budget = 8 * 1024 * 1024                                   # fp32 bytes for the (C, TN, TM) RBF tile
    if C * TN * TM * 4 > budget:
        TM = max(128, (budget // (C * TN * 4)) // 128 * 128)
    M_pad = _round_up(M, TM)
    N_pad = _round_up(N, TN)
    m_tiles = M_pad // TM
    n_tiles = N_pad // TN
    K = C * TN

    # ---- input prep: pad + layout; w-scale / bf16 cast folded into the same pass over y ----
    x_col = jnp.zeros((B, N_pad, 1), f32).at[:, :N, :].set(x.astype(f32))
    t_row = jnp.zeros((B, 1, M_pad), f32).at[:, :, :M].set(jnp.transpose(t.astype(f32), (0, 2, 1)))
    yw = jnp.transpose(y.astype(f32) * w, (0, 2, 1))           # (B, C, N), weight folded in
    yw = jnp.pad(yw, ((0, 0), (0, 0), (0, N_pad - N)))         # zero-pad: padded contexts contribute 0
    yw_flat = (yw.reshape(B, C, n_tiles, TN)
                 .transpose(0, 2, 1, 3)
                 .reshape(B, n_tiles, K)
                 .astype(jnp.bfloat16))                        # lane-dense per-N-tile LHS rows

    out_row = pl.pallas_call(
        _final_layer_kernel,
        out_shape=jax.ShapeDtypeStruct((B, 1, M_pad), f32),
        grid=(B, m_tiles, n_tiles),                            # N (reduction) innermost
        in_specs=[
            pl.BlockSpec((C, 1, 1), lambda bi, mi, ni: (0, 0, 0)),       # coeff (VMEM)
            pl.BlockSpec(memory_space=pltpu.MemorySpace.SMEM),           # bias scalar
            pl.BlockSpec((1, TN, 1), lambda bi, mi, ni: (bi, ni, 0)),    # x tile (column)
            pl.BlockSpec((1, 1, K), lambda bi, mi, ni: (bi, ni, 0)),     # yw tile (1, C*TN)
            pl.BlockSpec((1, 1, TM), lambda bi, mi, ni: (bi, 0, mi)),    # t tile (row)
        ],
        out_specs=pl.BlockSpec((1, 1, TM), lambda bi, mi, ni: (bi, 0, mi)),  # resident over ni
        compiler_params=pltpu.CompilerParams(
            dimension_semantics=("parallel", "parallel", "arbitrary"),
            vmem_limit_bytes=32 * 1024 * 1024,
        ),
    )(coeff, b, x_col, yw_flat, t_row)

    return out_row[:, 0, :M][..., None]                        # (B, M, out_channels=1)


def final_layer_reference(x, y, t, sigma, g_weight, g_bias):
    """Pure-JAX fp32 reference mirroring the PyTorch forward exactly."""
    dists = (x - jnp.transpose(t, (0, 2, 1))) ** 2             # (B, N, M)
    scales = jnp.exp(sigma)[None, None, None, :]               # (1, 1, 1, C)
    wt = jnp.exp(-0.5 * dists[..., None] / scales ** 2)        # (B, N, M, C)
    y_out = (y[:, :, None, :] * wt).sum(1)                     # (B, M, C)
    return jnp.einsum("bmc,oc->bmo", y_out, g_weight) + g_bias


if __name__ == "__main__":
    key = jax.random.PRNGKey(0)
    B, N, M, C = 2, 16, 8, 4       # batch, n_context, n_target, in_channels
    kx, ky, kt, kw = jax.random.split(key, 4)
    x = jax.random.normal(kx, (B, N, 1), jnp.float32)
    y = jax.random.normal(ky, (B, N, C), jnp.float32)
    t = jax.random.normal(kt, (B, M, 1), jnp.float32)

    # Deterministic parameter init (mirrors FinalLayer.__init__):
    #   sigma = log(init_length_scale) * ones(C); g = Linear(C, 1), xavier_normal weight, bias = 0
    init_length_scale = 0.1
    sigma = jnp.full((C,), math.log(init_length_scale), dtype=jnp.float32)
    xavier_std = math.sqrt(2.0 / (C + 1))
    g_weight = xavier_std * jax.random.normal(kw, (1, C), jnp.float32)
    g_bias = jnp.zeros((1,), jnp.float32)

    out = final_layer_forward(x, y, t, sigma, g_weight, g_bias)
    out = jax.block_until_ready(out)

    ref = final_layer_reference(x, y, t, sigma, g_weight, g_bias)
    assert out.shape == (B, M, 1), out.shape
    # bf16 matmul operands (fp32 accumulation, fp32 exp) -> slightly loosened tolerance vs fp32 ref.
    assert jnp.allclose(out, ref, atol=3e-2, rtol=3e-2), float(jnp.max(jnp.abs(out - ref)))
    print("KERNEL_OK")
</pallas_src>

<mosaic_0001>
module attributes {stable_mosaic.version = 11 : i64} {
  func.func @_final_layer_kernel(%arg0: i32, %arg1: i32, %arg2: i32, %arg3: memref<4x1x1xf32, #tpu.memory_space<vmem>>, %arg4: memref<1xf32, #tpu.memory_space<smem>>, %arg5: memref<1x128x1xf32, #tpu.memory_space<vmem>>, %arg6: memref<1x1x512xbf16, #tpu.memory_space<vmem>>, %arg7: memref<1x1x128xf32, #tpu.memory_space<vmem>>, %arg8: memref<1x1x128xf32, #tpu.memory_space<vmem>>) attributes {dimension_semantics = [#tpu.dimension_semantics<parallel>, #tpu.dimension_semantics<parallel>, #tpu.dimension_semantics<arbitrary>], iteration_bounds = array<i64: 2, 1, 1>, scalar_prefetch = 0 : i64, scratch_operands = 0 : i64, tpu.core_type = #tpu.core_type<tc>, window_params = [{pipeline_mode = #tpu.pipeline_mode<synchronous>, transform_indices = @transform_0, window_bounds = array<i64: 4, 1, 1>}, {transform_indices = @transform_1, window_bounds = array<i64: 1>}, {transform_indices = @transform_2, window_bounds = array<i64: 1, 128, 1>}, {transform_indices = @transform_3, window_bounds = array<i64: 1, 1, 512>}, {transform_indices = @transform_4, window_bounds = array<i64: 1, 1, 128>}, {transform_indices = @transform_5, window_bounds = array<i64: 1, 1, 128>}]} {
    %c0_i32 = arith.constant 0 : i32
    %0 = arith.cmpi eq, %arg2, %c0_i32 : i32
    %1 = arith.extui %0 : i1 to i32
    %c0_i32_0 = arith.constant 0 : i32
    %2 = arith.cmpi ne, %1, %c0_i32_0 : i32
    scf.if %2 {
      %cst_20 = arith.constant 0.000000e+00 : f32
      %31 = vector.broadcast %cst_20 : f32 to vector<1x1x128xf32>
      %c0_21 = arith.constant 0 : index
      %c0_22 = arith.constant 0 : index
      %c0_23 = arith.constant 0 : index
      %32 = vector.load %arg8[%c0_21, %c0_22, %c0_23] : memref<1x1x128xf32, #tpu.memory_space<vmem>>, vector<1x1x128xf32>
      tpu.vector_store %arg8[%c0_21, %c0_22, %c0_23], %31 {strides = array<i32>} : memref<1x1x128xf32, #tpu.memory_space<vmem>>, vector<1x1x128xf32>,
    } else {
    }
    %c0 = arith.constant 0 : index
    %c0_1 = arith.constant 0 : index
    %c0_2 = arith.constant 0 : index
    %3 = vector.load %arg5[%c0, %c0_1, %c0_2] : memref<1x128x1xf32, #tpu.memory_space<vmem>>, vector<1x128x1xf32>
    %4 = vector.shape_cast %3 : vector<1x128x1xf32> to vector<128x1xf32>
    %c0_3 = arith.constant 0 : index
    %c0_4 = arith.constant 0 : index
    %c0_5 = arith.constant 0 : index
    %5 = vector.load %arg7[%c0_3, %c0_4, %c0_5] : memref<1x1x128xf32, #tpu.memory_space<vmem>>, vector<1x1x128xf32>
    %6 = vector.shape_cast %5 : vector<1x1x128xf32> to vector<1x128xf32>
    %7 = vector.broadcast %4 : vector<128x1xf32> to vector<128x128xf32>
    %8 = vector.broadcast %6 : vector<1x128xf32> to vector<128x128xf32>
    %9 = arith.subf %7, %8 : vector<128x128xf32>
    %10 = arith.mulf %9, %9 : vector<128x128xf32>
    %c0_6 = arith.constant 0 : index
    %c0_7 = arith.constant 0 : index
    %c0_8 = arith.constant 0 : index
    %11 = vector.load %arg3[%c0_6, %c0_7, %c0_8] : memref<4x1x1xf32, #tpu.memory_space<vmem>>, vector<4x1x1xf32>
    %12 = vector.shape_cast %10 : vector<128x128xf32> to vector<1x128x128xf32>
    %13 = vector.broadcast %11 : vector<4x1x1xf32> to vector<4x128x128xf32>
    %14 = vector.broadcast %12 : vector<1x128x128xf32> to vector<4x128x128xf32>
    %15 = arith.mulf %13, %14 : vector<4x128x128xf32>
    %16 = math.exp %15 : vector<4x128x128xf32>
    %17 = vector.shape_cast %16 : vector<4x128x128xf32> to vector<512x128xf32>
    %c0_9 = arith.constant 0 : index
    %c0_10 = arith.constant 0 : index
    %c0_11 = arith.constant 0 : index
    %18 = vector.load %arg6[%c0_9, %c0_10, %c0_11] : memref<1x1x512xbf16, #tpu.memory_space<vmem>>, vector<1x1x512xbf16>
    %19 = vector.shape_cast %18 : vector<1x1x512xbf16> to vector<1x512xbf16>
    %20 = arith.truncf %17 : vector<512x128xf32> to vector<512x128xbf16>
    %cst = arith.constant dense<0.000000e+00> : vector<1x128xf32>
    %21 = tpu.matmul %19, %20, %cst {dimension_numbers = #tpu.dot_dimension_numbers<[1], [0], [0], [1], [0, 0, 1, 1], [], []>} : vector<1x512xbf16>, vector<512x128xbf16>, vector<1x128xf32> -> vector<1x128xf32>
    %c0_12 = arith.constant 0 : index
    %c0_13 = arith.constant 0 : index
    %c0_14 = arith.constant 0 : index
    %22 = vector.load %arg8[%c0_12, %c0_13, %c0_14] : memref<1x1x128xf32, #tpu.memory_space<vmem>>, vector<1x1x128xf32>
    %23 = vector.shape_cast %22 : vector<1x1x128xf32> to vector<1x128xf32>
    %24 = arith.addf %23, %21 : vector<1x128xf32>
    %c0_15 = arith.constant 0 : index
    %c0_16 = arith.constant 0 : index
    %c0_17 = arith.constant 0 : index
    %25 = vector.load %arg8[%c0_15, %c0_16, %c0_17] : memref<1x1x128xf32, #tpu.memory_space<vmem>>, vector<1x1x128xf32>
    %26 = vector.shape_cast %25 : vector<1x1x128xf32> to vector<1x128xf32>
    %27 = vector.shape_cast %24 : vector<1x128xf32> to vector<1x1x128xf32>
    tpu.vector_store %arg8[%c0_15, %c0_16, %c0_17], %27 {strides = array<i32>} : memref<1x1x128xf32, #tpu.memory_space<vmem>>, vector<1x1x128xf32>,
    %c0_i32_18 = arith.constant 0 : i32
    %28 = arith.cmpi eq, %arg2, %c0_i32_18 : i32
    %29 = arith.extui %28 : i1 to i32
    %c0_i32_19 = arith.constant 0 : i32
    %30 = arith.cmpi ne, %29, %c0_i32_19 : i32
    scf.if %30 {
      %c0_20 = arith.constant 0 : index
      %c0_21 = arith.constant 0 : index
      %c0_22 = arith.constant 0 : index
      %31 = vector.load %arg8[%c0_20, %c0_21, %c0_22] : memref<1x1x128xf32, #tpu.memory_space<vmem>>, vector<1x1x128xf32>
      %c0_23 = arith.constant 0 : index
      %32 = memref.load %arg4[%c0_23] : memref<1xf32, #tpu.memory_space<smem>>
      %33 = vector.broadcast %32 : f32 to vector<1x1x128xf32>
      %34 = arith.addf %31, %33 : vector<1x1x128xf32>
      %c0_24 = arith.constant 0 : index
      %c0_25 = arith.constant 0 : index
      %c0_26 = arith.constant 0 : index
      %35 = vector.load %arg8[%c0_24, %c0_25, %c0_26] : memref<1x1x128xf32, #tpu.memory_space<vmem>>, vector<1x1x128xf32>
      tpu.vector_store %arg8[%c0_24, %c0_25, %c0_26], %34 {strides = array<i32>} : memref<1x1x128xf32, #tpu.memory_space<vmem>>, vector<1x1x128xf32>,
    } else {
    }
    return
  }
  func.func @transform_0(%arg0: i32, %arg1: i32, %arg2: i32) -> (i32, i32, i32) {
    %c0_i32 = arith.constant 0 : i32
    %c0_i32_0 = arith.constant 0 : i32
    %c0_i32_1 = arith.constant 0 : i32
    %c0_i32_2 = arith.constant 0 : i32
    return %c0_i32, %c0_i32_0, %c0_i32_1 : i32, i32, i32
  }
  func.func @transform_1(%arg0: i32, %arg1: i32, %arg2: i32) -> i32 {
    %c0_i32 = arith.constant 0 : i32
    %c0_i32_0 = arith.constant 0 : i32
    return %c0_i32 : i32
  }
  func.func @transform_2(%arg0: i32, %arg1: i32, %arg2: i32) -> (i32, i32, i32) {
    %c0_i32 = arith.constant 0 : i32
    %c0_i32_0 = arith.constant 0 : i32
    return %arg0, %arg2, %c0_i32 : i32, i32, i32
  }
  func.func @transform_3(%arg0: i32, %arg1: i32, %arg2: i32) -> (i32, i32, i32) {
    %c0_i32 = arith.constant 0 : i32
    %c0_i32_0 = arith.constant 0 : i32
    return %arg0, %arg2, %c0_i32 : i32, i32, i32
  }
  func.func @transform_4(%arg0: i32, %arg1: i32, %arg2: i32) -> (i32, i32, i32) {
    %c0_i32 = arith.constant 0 : i32
    %c0_i32_0 = arith.constant 0 : i32
    return %arg0, %c0_i32, %arg1 : i32, i32, i32
  }
  func.func @transform_5(%arg0: i32, %arg1: i32, %arg2: i32) -> (i32, i32, i32) {
    %c0_i32 = arith.constant 0 : i32
    %c0_i32_0 = arith.constant 0 : i32
    return %arg0, %c0_i32, %arg1 : i32, i32, i32
  }
}

</mosaic_0001>

<llo_original>
// kernel: tpu_custom_call.1
$region0: #{tpu_custom_call.1}
  #allocation0 [shape = 'u32[]', space=smem, size = 0x4, offset = 0x4, fixed_abs, tag = 'smem constant byte address 0x4 - core index']
  #allocation1 [shape = 'u32[144,128]{1,0:T(1,128)}', space=vmem, size = 0x12000, scoped, tag = 'internal scratch']
  #allocation2 [shape = 'f32[1]{0:T(128)S(6)}', space=smem, size = 0x200, scoped, tag = 'scoped memory for tpu_custom_call.1']
  %s0 = inlined_call_operand.vmem [shape: f32[4,1,1], index: 0, kind: input, shape index: {}]
  %s1 = inlined_call_operand.<no memory space> [shape: f32[1], index: 1, kind: input, shape index: {}]
  %s2 = inlined_call_operand.vmem [shape: f32[2,128,1], index: 2, kind: input, shape index: {}]
  %s3 = inlined_call_operand.vmem [shape: bf16[2,1,512], index: 3, kind: input, shape index: {}]
  %s4 = inlined_call_operand.vmem [shape: f32[2,1,128], index: 4, kind: input, shape index: {}]
  %s5 = inlined_call_operand.hbm [shape: f32[2,1,128], index: 5, kind: output, shape index: {}]
  %s6 = sld [smem:[#allocation0]]
  $region61: #{tpu_custom_call.1} parent=0
    _
  %s8 = ssub.s32 1, %s6
  %s9 = scalar_select 0, %s8, %s6
  %10 = sst [smem:[#allocation2]] %s1
  $region1: #{tpu_custom_call.1} parent=0
    #allocation3 [shape = 'u8[1024]{0}', space=vmem, size = 0x400, scoped, tag = 'output window, operand 0']
    #allocation4 [shape = 's32[2]{0}', space=sflag, size = 0x8, scoped, tag = 'scoped memory for tpu_custom_call.1']
    %11 = vsyncpa [#allocation4], 0
    %s12 = scalar_lea.sflag [#allocation4], 1
    %13 = vsyncpa %s12, 0
    loop: start=0, step=1, limit=4
    $region2: #{tpu_custom_call.1} parent=1 // loop_pre_header
      _
    $region3: #{tpu_custom_call.1} parent=1 // loop_header
      %s15 = sphi 0, %s19
      %p16 = scmp.ge.s32.totalorder %s15, 4
      %s22 = sphi 0, %s41
      %s23 = sphi 0, %s37
      %s24 = sphi 0, %s33
      %s25 = sphi 0, %s22
      %s26 = sphi 0, %s23
      %s27 = sphi 0, %s24
      %s28 = sphi 0, %s25
      %s29 = sphi 0, %s26
      %s30 = sphi 0, %s27
      %s42 = sphi 0, %s42
      %s44 = sphi 0, %s42
      %s45 = sphi 0, %s44
      %s59 = sphi 0, %s45
      %s63 = sphi 0, %s63
      %s65 = sphi 0, %s63
      %s66 = sphi 0, %s65
      %s80 = sphi 0, %s66
      %s88 = sphi 0, %s90
      %s91 = sphi 0, %s88
      %s92 = sphi 0, %s91
      %s108 = sphi 0, %s92
      %s116 = sphi 0, %s118
      %s119 = sphi 0, %s116
      %s120 = sphi 0, %s119
      %s136 = sphi 0, %s120
      %s144 = sphi 0, %s146
      %s147 = sphi 0, %s144
      %s148 = sphi 0, %s147
      %s164 = sphi 0, %s148
      %s172 = sphi 0, %s174
      %s175 = sphi 0, %s172
      %s176 = sphi 0, %s175
      %s192 = sphi 0, %s176
    $region4: #{tpu_custom_call.1} parent=1 // loop_header_branch
      %18 = sbr.rel (%p16) target = $region8
    $region5: #{tpu_custom_call.1} parent=1 // loop_body
      %s20 = ssub.s32 %s15, 1
      %s21 = ssub.s32 %s15, 2
      %s31 = sadd.s32 1, %s24
      %p32 = scmp.ge.s32.totalorder %s31, 1
      %s33 = scalar_select %p32, 0, %s31
      %s34 = sadd.s32 1, %s23
      %s35 = scalar_select %p32, %s34, %s23
      %p36 = scmp.ge.s32.totalorder %s35, 1
      %s37 = scalar_select %p36, 0, %s35
      %s38 = sadd.s32 1, %s22
      %s39 = scalar_select %p36, %s38, %s22
      %p40 = scmp.ge.s32.totalorder %s39, 2
      %s41 = scalar_select %p40, 0, %s39
      %s43 = sadd.s32 %s42, 1
      %p46 = scmp.eq.s32.totalorder %s15, 1
      %p47 = scmp.ne.s32.totalorder %s42, %s44
      %p48 = scmp.eq.s32.totalorder %s15, 0
      %p49 = por %p47, %p48
      %p50 = scmp.ne.s32.totalorder %s42, %s44
      %p51 = scmp.eq.s32.totalorder %s20, 1
      %p52 = por %p50, %p51
      %p53 = scmp.ne.s32.totalorder %s44, %s45
      %p54 = scmp.eq.s32.totalorder %s20, 0
      %p55 = por %p53, %p54
      %p56 = scmp.ne.s32.totalorder %s44, %s45
      %p57 = scmp.eq.s32.totalorder %s21, 1
      %p58 = por %p56, %p57
      %p60 = scmp.ne.s32.totalorder %s45, %s59
      %p61 = scmp.eq.s32.totalorder %s21, 0
      %p62 = por %p60, %p61
      %s64 = sadd.s32 %s63, 1
      %p67 = scmp.eq.s32.totalorder %s15, 1
      %p68 = scmp.ne.s32.totalorder %s63, %s65
      %p69 = scmp.eq.s32.totalorder %s15, 0
      %p70 = por %p68, %p69
      %p71 = scmp.ne.s32.totalorder %s63, %s65
      %p72 = scmp.eq.s32.totalorder %s20, 1
      %p73 = por %p71, %p72
      %p74 = scmp.ne.s32.totalorder %s65, %s66
      %p75 = scmp.eq.s32.totalorder %s20, 0
      %p76 = por %p74, %p75
      %p77 = scmp.ne.s32.totalorder %s65, %s66
      %p78 = scmp.eq.s32.totalorder %s21, 1
      %p79 = por %p77, %p78
      %p81 = scmp.ne.s32.totalorder %s66, %s80
      %p82 = scmp.eq.s32.totalorder %s21, 0
      %p83 = por %p81, %p82
      %s84 = ssub.s32 %s22, %s41
      %s85 = ssub.s32 %s24, %s33
      %s86 = sor.u32 %s84, %s85
      %p87 = scmp.eq.s32.totalorder %s86, 0
      %s89 = sadd.s32 %s88, 1
      %s90 = scalar_select %p87, %s88, %s89
      %p93 = pneg %p87
      %p94 = scmp.eq.s32.totalorder %s15, 1
      %p95 = por %p93, %p94
      %p96 = scmp.ne.s32.totalorder %s88, %s91
      %p97 = scmp.eq.s32.totalorder %s15, 0
      %p98 = por %p96, %p97
      %p99 = scmp.ne.s32.totalorder %s88, %s91
      %p100 = scmp.eq.s32.totalorder %s20, 1
      %p101 = por %p99, %p100
      %p102 = scmp.ne.s32.totalorder %s91, %s92
      %p103 = scmp.eq.s32.totalorder %s20, 0
      %p104 = por %p102, %p103
      %p105 = scmp.ne.s32.totalorder %s91, %s92
      %p106 = scmp.eq.s32.totalorder %s21, 1
      %p107 = por %p105, %p106
      %p109 = scmp.ne.s32.totalorder %s92, %s108
      %p110 = scmp.eq.s32.totalorder %s21, 0
      %p111 = por %p109, %p110
      %s112 = ssub.s32 %s22, %s41
      %s113 = ssub.s32 %s24, %s33
      %s114 = sor.u32 %s112, %s113
      %p115 = scmp.eq.s32.totalorder %s114, 0
      %s117 = sadd.s32 %s116, 1
      %s118 = scalar_select %p115, %s116, %s117
      %p121 = pneg %p115
      %p122 = scmp.eq.s32.totalorder %s15, 1
      %p123 = por %p121, %p122
      %p124 = scmp.ne.s32.totalorder %s116, %s119
      %p125 = scmp.eq.s32.totalorder %s15, 0
      %p126 = por %p124, %p125
      %p127 = scmp.ne.s32.totalorder %s116, %s119
      %p128 = scmp.eq.s32.totalorder %s20, 1
      %p129 = por %p127, %p128
      %p130 = scmp.ne.s32.totalorder %s119, %s120
      %p131 = scmp.eq.s32.totalorder %s20, 0
      %p132 = por %p130, %p131
      %p133 = scmp.ne.s32.totalorder %s119, %s120
      %p134 = scmp.eq.s32.totalorder %s21, 1
      %p135 = por %p133, %p134
      %p137 = scmp.ne.s32.totalorder %s120, %s136
      %p138 = scmp.eq.s32.totalorder %s21, 0
      %p139 = por %p137, %p138
      %s140 = ssub.s32 %s22, %s41
      %s141 = ssub.s32 %s23, %s37
      %s142 = sor.u32 %s140, %s141
      %p143 = scmp.eq.s32.totalorder %s142, 0
      %s145 = sadd.s32 %s144, 1
      %s146 = scalar_select %p143, %s144, %s145
      %p149 = pneg %p143
      %p150 = scmp.eq.s32.totalorder %s15, 1
      %p151 = por %p149, %p150
      %p152 = scmp.ne.s32.totalorder %s144, %s147
      %p153 = scmp.eq.s32.totalorder %s15, 0
      %p154 = por %p152, %p153
      %p155 = scmp.ne.s32.totalorder %s144, %s147
      %p156 = scmp.eq.s32.totalorder %s20, 1
      %p157 = por %p155, %p156
      %p158 = scmp.ne.s32.totalorder %s147, %s148
      %p159 = scmp.eq.s32.totalorder %s20, 0
      %p160 = por %p158, %p159
      %p161 = scmp.ne.s32.totalorder %s147, %s148
      %p162 = scmp.eq.s32.totalorder %s21, 1
      %p163 = por %p161, %p162
      %p165 = scmp.ne.s32.totalorder %s148, %s164
      %p166 = scmp.eq.s32.totalorder %s21, 0
      %p167 = por %p165, %p166
      %s168 = ssub.s32 %s22, %s41
      %s169 = ssub.s32 %s23, %s37
      %s170 = sor.u32 %s168, %s169
      %p171 = scmp.eq.s32.totalorder %s170, 0
      %s173 = sadd.s32 %s172, 1
      %s174 = scalar_select %p171, %s172, %s173
      %p177 = pneg %p171
      %p178 = scmp.eq.s32.totalorder %s15, 1
      %p179 = por %p177, %p178
      %p180 = scmp.ne.s32.totalorder %s172, %s175
      %p181 = scmp.eq.s32.totalorder %s15, 0
      %p182 = por %p180, %p181
      %p183 = scmp.ne.s32.totalorder %s172, %s175
      %p184 = scmp.eq.s32.totalorder %s20, 1
      %p185 = por %p183, %p184
      %p186 = scmp.ne.s32.totalorder %s175, %s176
      %p187 = scmp.eq.s32.totalorder %s20, 0
      %p188 = por %p186, %p187
      %p189 = scmp.ne.s32.totalorder %s175, %s176
      %p190 = scmp.eq.s32.totalorder %s21, 1
      %p191 = por %p189, %p190
      %p193 = scmp.ne.s32.totalorder %s176, %s192
      %p194 = scmp.eq.s32.totalorder %s21, 0
      %p195 = por %p193, %p194
      %p196 = scmp.le.s32.totalorder 1, %s15
      %p197 = scmp.lt.s32.totalorder %s15, 3
      %p198 = pnand %p196, %p197
      %p199 = pneg %p198
      // Predicated region
      $region9: #{tpu_custom_call.1} parent=5 // pred_check
        _
      $region10: #{tpu_custom_call.1} parent=5 // pred_check_branch
        %201 = sbr.rel (%p198) target = $region12
      $region11: #{tpu_custom_call.1} parent=5 // pred_region
        %s202 = ssub.s32 %s15, 1
        // Predicated region
        $region13: #{tpu_custom_call.1} parent=11 // pred_check
          %p203 = pneg %p55
        $region14: #{tpu_custom_call.1} parent=11 // pred_check_branch
          %205 = sbr.rel (%p203) target = $region16
        $region15: #{tpu_custom_call.1} parent=11 // pred_region
          _
        $region16: #{tpu_custom_call.1} parent=11 // pred_fallthru
          _
        // Predicated region
        $region17: #{tpu_custom_call.1} parent=11 // pred_check
          %p206 = pneg %p76
        $region18: #{tpu_custom_call.1} parent=11 // pred_check_branch
          %208 = sbr.rel (%p206) target = $region20
        $region19: #{tpu_custom_call.1} parent=11 // pred_region
          _
        $region20: #{tpu_custom_call.1} parent=11 // pred_fallthru
          _
      $region12: #{tpu_custom_call.1} parent=5 // pred_fallthru
        _
      %p209 = scmp.lt.s32.totalorder %s15, 2
      // Predicated region
      $region21: #{tpu_custom_call.1} parent=5 // pred_check
        %p210 = pneg %p209
      $region22: #{tpu_custom_call.1} parent=5 // pred_check_branch
        %212 = sbr.rel (%p210) target = $region24
      $region23: #{tpu_custom_call.1} parent=5 // pred_region
        // Predicated region
        $region25: #{tpu_custom_call.1} parent=23 // pred_check
          %p213 = pneg %p98
        $region26: #{tpu_custom_call.1} parent=23 // pred_check_branch
          %215 = sbr.rel (%p213) target = $region28
        $region27: #{tpu_custom_call.1} parent=23 // pred_region
          %s216 = smul.u32 16, %s24
          %p217 = scmp.lt.s32.totalorder %s22, 1
          %s218 = scalar_select %p217, %s22, 1
          %p219 = scmp.lt.s32.totalorder %s216, 15
          %s220 = scalar_select %p219, %s216, 15
          %s221 = smul.addr %s218, 16
          %s222 = sadd.s32 %s220, %s221
          %s223 = smul.addr %s222, 8
          %s224 = scalar_lea.vmem %s2, %s223
          %s225 = smul.u32 16, %s24
        $region28: #{tpu_custom_call.1} parent=23 // pred_fallthru
          _
        // Predicated region
        $region29: #{tpu_custom_call.1} parent=23 // pred_check
          %p226 = pneg %p126
        $region30: #{tpu_custom_call.1} parent=23 // pred_check_branch
          %228 = sbr.rel (%p226) target = $region32
        $region31: #{tpu_custom_call.1} parent=23 // pred_region
          %p229 = scmp.lt.s32.totalorder %s22, 1
          %s230 = scalar_select %p229, %s22, 1
          %p231 = scmp.lt.s32.totalorder %s24, 0
          %s232 = scalar_select %p231, %s24, 0
          %s233 = smul.addr %s232, 4
          %s234 = smul.addr %s230, 4
          %s235 = sadd.s32 %s233, %s234
          %s236 = scalar_lea.vmem %s3, %s235
        $region32: #{tpu_custom_call.1} parent=23 // pred_fallthru
          _
        // Predicated region
        $region33: #{tpu_custom_call.1} parent=23 // pred_check
          %p237 = pneg %p154
        $region34: #{tpu_custom_call.1} parent=23 // pred_check_branch
          %239 = sbr.rel (%p237) target = $region36
        $region35: #{tpu_custom_call.1} parent=23 // pred_region
          %p240 = scmp.lt.s32.totalorder %s22, 1
          %s241 = scalar_select %p240, %s22, 1
          %p242 = scmp.lt.s32.totalorder %s23, 0
          %s243 = scalar_select %p242, %s23, 0
          %s244 = sadd.s32 %s243, %s241
          %s245 = scalar_lea.vmem %s4, %s244
        $region36: #{tpu_custom_call.1} parent=23 // pred_fallthru
          _
      $region24: #{tpu_custom_call.1} parent=5 // pred_fallthru
        _
      %p246 = scmp.le.s32.totalorder 1, %s15
      %p247 = scmp.lt.s32.totalorder %s15, 3
      %p248 = pnand %p246, %p247
      %p249 = pneg %p248
      // Predicated region
      $region37: #{tpu_custom_call.1} parent=5 // pred_check
        _
      $region38: #{tpu_custom_call.1} parent=5 // pred_check_branch
        %251 = sbr.rel (%p248) target = $region40
      $region39: #{tpu_custom_call.1} parent=5 // pred_region
        %s252 = ssub.s32 %s15, 1
        %p253 = pneg %p55
        %p254 = pneg %p52
        %p255 = pneg %p76
        %p256 = pneg %p73
        %s257 = smul.u32 16, %s27
        %p258 = scmp.lt.s32.totalorder %s25, 1
        %s259 = scalar_select %p258, %s25, 1
        %p260 = scmp.lt.s32.totalorder %s257, 15
        %s261 = scalar_select %p260, %s257, 15
        %s262 = smul.addr %s259, 16
        %s263 = sadd.s32 %s261, %s262
        %s264 = smul.addr %s263, 8
        %s265 = scalar_lea.vmem %s2, %s264
        %p266 = pneg %p104
        %p267 = pneg %p101
        %p268 = scmp.lt.s32.totalorder %s25, 1
        %s269 = scalar_select %p268, %s25, 1
        %p270 = scmp.lt.s32.totalorder %s27, 0
        %s271 = scalar_select %p270, %s27, 0
        %s272 = smul.addr %s271, 4
        %s273 = smul.addr %s269, 4
        %s274 = sadd.s32 %s272, %s273
        %s275 = scalar_lea.vmem %s3, %s274
        %p276 = pneg %p132
        %p277 = pneg %p129
        %p278 = scmp.lt.s32.totalorder %s25, 1
        %s279 = scalar_select %p278, %s25, 1
        %p280 = scmp.lt.s32.totalorder %s26, 0
        %s281 = scalar_select %p280, %s26, 0
        %s282 = sadd.s32 %s281, %s279
        %s283 = scalar_lea.vmem %s4, %s282
        %p284 = pneg %p160
        %p285 = pneg %p157
        %p286 = pneg %p188
        %p287 = pneg %p185
        %s288 = sand.u32 %s175, 1
        %s289 = scalar_lea.sflag [#allocation4], %s288
        %s290 = sand.u32 %s175, 1
        %s291 = scalar_lea.vmem [#allocation3], %s290
        %s292 = smul.u32 16, %s27
        %p293 = scmp.lt.s32.totalorder %s25, 1
        %s294 = scalar_select %p293, %s25, 1
        %p295 = scmp.lt.s32.totalorder %s292, 15
        %s296 = scalar_select %p295, %s292, 15
        %s297 = smul.addr %s294, 16
        %s298 = sadd.s32 %s296, %s297
        %s299 = smul.addr %s298, 8
        %s300 = scalar_lea.vmem %s2, %s299
        %s301 = smul.u32 16, %s27
        %p302 = scmp.lt.s32.totalorder %s25, 1
        %s303 = scalar_select %p302, %s25, 1
        %p304 = scmp.lt.s32.totalorder %s27, 0
        %s305 = scalar_select %p304, %s27, 0
        %s306 = smul.addr %s305, 4
        %s307 = smul.addr %s303, 4
        %s308 = sadd.s32 %s306, %s307
        %s309 = scalar_lea.vmem %s3, %s308
        %p310 = scmp.lt.s32.totalorder %s25, 1
        %s311 = scalar_select %p310, %s25, 1
        %p312 = scmp.lt.s32.totalorder %s26, 0
        %s313 = scalar_select %p312, %s26, 0
        %s314 = sadd.s32 %s313, %s311
        %s315 = scalar_lea.vmem %s4, %s314
        %p317 = scmp.eq.s32.totalorder %s27, 0
        // Predicated region
        $region41: #{tpu_custom_call.1} parent=39 // pred_check
          %p318 = pneg %p317
        $region42: #{tpu_custom_call.1} parent=39 // pred_check_branch
          %320 = sbr.rel (%p318) target = $region44
        $region43: #{tpu_custom_call.1} parent=39 // pred_region
          %321 = vst [vmem:[%s291] sm:$0x1] 0.0
        $region44: #{tpu_custom_call.1} parent=39 // pred_fallthru
          _
        %v322 = vld [vmem:[%s300] sm:$0xff]
        %v323 = vld [vmem:[%s300 + $0x8] sm:$0xff]
        %v324 = vld [vmem:[%s300 + $0x10] sm:$0xff]
        %v325 = vld [vmem:[%s300 + $0x18] sm:$0xff]
        %v326 = vld [vmem:[%s300 + $0x20] sm:$0xff]
        %v327 = vld [vmem:[%s300 + $0x28] sm:$0xff]
        %v328 = vld [vmem:[%s300 + $0x30] sm:$0xff]
        %v329 = vld [vmem:[%s300 + $0x38] sm:$0xff]
        %v330 = vld [vmem:[%s300 + $0x40] sm:$0xff]
        %v331 = vld [vmem:[%s300 + $0x48] sm:$0xff]
        %v332 = vld [vmem:[%s300 + $0x50] sm:$0xff]
        %v333 = vld [vmem:[%s300 + $0x58] sm:$0xff]
        %v334 = vld [vmem:[%s300 + $0x60] sm:$0xff]
        %v335 = vld [vmem:[%s300 + $0x68] sm:$0xff]
        %v336 = vld [vmem:[%s300 + $0x70] sm:$0xff]
        %v337 = vld [vmem:[%s300 + $0x78] sm:$0xff]
        %v338 = vld [vmem:[%s315] sm:$0x1]
        %340 = vset.pattern.permute.xlu0 0
        %341 = vperm.xlu0 %340, %v322
        %v342 = vpop.permute.xlu0 %341
        %345 = vset.pattern.permute.xlu0 0
        %346 = vperm.xlu0 %345, %v323
        %v347 = vpop.permute.xlu0 %346
        %350 = vset.pattern.permute.xlu0 0
        %351 = vperm.xlu0 %350, %v324
        %v352 = vpop.permute.xlu0 %351
        %355 = vset.pattern.permute.xlu0 0
        %356 = vperm.xlu0 %355, %v325
        %v357 = vpop.permute.xlu0 %356
        %360 = vset.pattern.permute.xlu0 0
        %361 = vperm.xlu0 %360, %v326
        %v362 = vpop.permute.xlu0 %361
        %365 = vset.pattern.permute.xlu0 0
        %366 = vperm.xlu0 %365, %v327
        %v367 = vpop.permute.xlu0 %366
        %370 = vset.pattern.permute.xlu0 0
        %371 = vperm.xlu0 %370, %v328
        %v372 = vpop.permute.xlu0 %371
        %375 = vset.pattern.permute.xlu0 0
        %376 = vperm.xlu0 %375, %v329
        %v377 = vpop.permute.xlu0 %376
        %380 = vset.pattern.permute.xlu0 0
        %381 = vperm.xlu0 %380, %v330
        %v382 = vpop.permute.xlu0 %381
        %385 = vset.pattern.permute.xlu0 0
        %386 = vperm.xlu0 %385, %v331
        %v387 = vpop.permute.xlu0 %386
        %390 = vset.pattern.permute.xlu0 0
        %391 = vperm.xlu0 %390, %v332
        %v392 = vpop.permute.xlu0 %391
        %395 = vset.pattern.permute.xlu0 0
        %396 = vperm.xlu0 %395, %v333
        %v397 = vpop.permute.xlu0 %396
        %400 = vset.pattern.permute.xlu0 0
        %401 = vperm.xlu0 %400, %v334
        %v402 = vpop.permute.xlu0 %401
        %405 = vset.pattern.permute.xlu0 0
        %406 = vperm.xlu0 %405, %v335
        %v407 = vpop.permute.xlu0 %406
        %410 = vset.pattern.permute.xlu0 0
        %411 = vperm.xlu0 %410, %v336
        %v412 = vpop.permute.xlu0 %411
        %415 = vset.pattern.permute.xlu0 0
        %416 = vperm.xlu0 %415, %v337
        %v417 = vpop.permute.xlu0 %416
        %v420 = vlaneseq
        %v421 = vshrl.u32 %v420, 7
        %v422 = vsub.s32 0, %v421
        %v423 = vrot.slane %v338, %v422
        %v425 = vsub.f32 %v342, %v423
        %v426 = vsub.f32 %v347, %v423
        %v427 = vsub.f32 %v352, %v423
        %v428 = vsub.f32 %v357, %v423
        %v429 = vsub.f32 %v362, %v423
        %v430 = vsub.f32 %v367, %v423
        %v431 = vsub.f32 %v372, %v423
        %v432 = vsub.f32 %v377, %v423
        %v433 = vsub.f32 %v382, %v423
        %v434 = vsub.f32 %v387, %v423
        %v435 = vsub.f32 %v392, %v423
        %v436 = vsub.f32 %v397, %v423
        %v437 = vsub.f32 %v402, %v423
        %v438 = vsub.f32 %v407, %v423
        %v439 = vsub.f32 %v412, %v423
        %v440 = vsub.f32 %v417, %v423
        %v441 = vmul.f32 %v425, %v425
        %v442 = vmul.f32 %v426, %v426
        %v443 = vmul.f32 %v427, %v427
        %v444 = vmul.f32 %v428, %v428
        %v445 = vmul.f32 %v429, %v429
        %v446 = vmul.f32 %v430, %v430
        %v447 = vmul.f32 %v431, %v431
        %v448 = vmul.f32 %v432, %v432
        %v449 = vmul.f32 %v433, %v433
        %v450 = vmul.f32 %v434, %v434
        %v451 = vmul.f32 %v435, %v435
        %v452 = vmul.f32 %v436, %v436
        %v453 = vmul.f32 %v437, %v437
        %v454 = vmul.f32 %v438, %v438
        %v455 = vmul.f32 %v439, %v439
        %v456 = vmul.f32 %v440, %v440
        %v457 = vld [vmem:[%s0] sm:$0x1]
        %v458 = vld [vmem:[%s0 + $0x1] sm:$0x1]
        %v459 = vld [vmem:[%s0 + $0x2] sm:$0x1]
        %v460 = vld [vmem:[%s0 + $0x3] sm:$0x1]
        %v465 = vlaneseq
        %v466 = vshrl.u32 %v465, 7
        %v467 = vsub.s32 0, %v466
        %v468 = vrot.slane %v457, %v467
        %v469 = vlaneseq
        %v470 = vshrl.u32 %v469, 7
        %v471 = vsub.s32 0, %v470
        %v472 = vrot.slane %v458, %v471
        %v473 = vlaneseq
        %v474 = vshrl.u32 %v473, 7
        %v475 = vsub.s32 0, %v474
        %v476 = vrot.slane %v459, %v475
        %v477 = vlaneseq
        %v478 = vshrl.u32 %v477, 7
        %v479 = vsub.s32 0, %v478
        %v480 = vrot.slane %v460, %v479
        %481 = vset.pattern.permute.xlu0 0
        %482 = vperm.xlu0 %481, %v468
        %v483 = vpop.permute.xlu0 %482
        %485 = vset.pattern.permute.xlu0 0
        %486 = vperm.xlu0 %485, %v472
        %v487 = vpop.permute.xlu0 %486
        %489 = vset.pattern.permute.xlu0 0
        %490 = vperm.xlu0 %489, %v476
        %v491 = vpop.permute.xlu0 %490
        %493 = vset.pattern.permute.xlu0 0
        %494 = vperm.xlu0 %493, %v480
        %v495 = vpop.permute.xlu0 %494
        %v497 = vmul.f32 %v483, %v441
        %v498 = vmul.f32 %v483, %v442
        %v499 = vmul.f32 %v483, %v443
        %v500 = vmul.f32 %v483, %v444
        %v501 = vmul.f32 %v483, %v445
        %v502 = vmul.f32 %v483, %v446
        %v503 = vmul.f32 %v483, %v447
        %v504 = vmul.f32 %v483, %v448
        %v505 = vmul.f32 %v483, %v449
        %v506 = vmul.f32 %v483, %v450
        %v507 = vmul.f32 %v483, %v451
        %v508 = vmul.f32 %v483, %v452
        %v509 = vmul.f32 %v483, %v453
        %v510 = vmul.f32 %v483, %v454
        %v511 = vmul.f32 %v483, %v455
        %v512 = vmul.f32 %v483, %v456
        %v513 = vmul.f32 %v487, %v441
        %v514 = vmul.f32 %v487, %v442
        %v515 = vmul.f32 %v487, %v443
        %v516 = vmul.f32 %v487, %v444
        %v517 = vmul.f32 %v487, %v445
        %v518 = vmul.f32 %v487, %v446
        %v519 = vmul.f32 %v487, %v447
        %v520 = vmul.f32 %v487, %v448
        %v521 = vmul.f32 %v487, %v449
        %v522 = vmul.f32 %v487, %v450
        %v523 = vmul.f32 %v487, %v451
        %v524 = vmul.f32 %v487, %v452
        %v525 = vmul.f32 %v487, %v453
        %v526 = vmul.f32 %v487, %v454
        %v527 = vmul.f32 %v487, %v455
        %v528 = vmul.f32 %v487, %v456
        %v529 = vmul.f32 %v491, %v441
        %v530 = vmul.f32 %v491, %v442
        %v531 = vmul.f32 %v491, %v443
        %v532 = vmul.f32 %v491, %v444
        %v533 = vmul.f32 %v491, %v445
        %v534 = vmul.f32 %v491, %v446
        %v535 = vmul.f32 %v491, %v447
        %v536 = vmul.f32 %v491, %v448
        %v537 = vmul.f32 %v491, %v449
        %v538 = vmul.f32 %v491, %v450
        %v539 = vmul.f32 %v491, %v451
        %v540 = vmul.f32 %v491, %v452
        %v541 = vmul.f32 %v491, %v453
        %v542 = vmul.f32 %v491, %v454
        %v543 = vmul.f32 %v491, %v455
        %v544 = vmul.f32 %v491, %v456
        %v545 = vmul.f32 %v495, %v441
        %v546 = vmul.f32 %v495, %v442
        %v547 = vmul.f32 %v495, %v443
        %v548 = vmul.f32 %v495, %v444
        %v549 = vmul.f32 %v495, %v445
        %v550 = vmul.f32 %v495, %v446
        %v551 = vmul.f32 %v495, %v447
        %v552 = vmul.f32 %v495, %v448
        %v553 = vmul.f32 %v495, %v449
        %v554 = vmul.f32 %v495, %v450
        %v555 = vmul.f32 %v495, %v451
        %v556 = vmul.f32 %v495, %v452
        %v557 = vmul.f32 %v495, %v453
        %v558 = vmul.f32 %v495, %v454
        %v559 = vmul.f32 %v495, %v455
        %v560 = vmul.f32 %v495, %v456
        %v561 = vmul.f32 %v497, 1.442695
        %v562 = vpow.pop %v561
        %v563 = vmul.f32 %v498, 1.442695
        %v564 = vpow.pop %v563
        %v565 = vmul.f32 %v499, 1.442695
        %v566 = vpow.pop %v565
        %v567 = vmul.f32 %v500, 1.442695
        %v568 = vpow.pop %v567
        %v569 = vmul.f32 %v501, 1.442695
        %v570 = vpow.pop %v569
        %v571 = vmul.f32 %v502, 1.442695
        %v572 = vpow.pop %v571
        %v573 = vmul.f32 %v503, 1.442695
        %v574 = vpow.pop %v573
        %v575 = vmul.f32 %v504, 1.442695
        %v576 = vpow.pop %v575
        %v577 = vmul.f32 %v505, 1.442695
        %v578 = vpow.pop %v577
        %v579 = vmul.f32 %v506, 1.442695
        %v580 = vpow.pop %v579
        %v581 = vmul.f32 %v507, 1.442695
        %v582 = vpow.pop %v581
        %v583 = vmul.f32 %v508, 1.442695
        %v584 = vpow.pop %v583
        %v585 = vmul.f32 %v509, 1.442695
        %v586 = vpow.pop %v585
        %v587 = vmul.f32 %v510, 1.442695
        %v588 = vpow.pop %v587
        %v589 = vmul.f32 %v511, 1.442695
        %v590 = vpow.pop %v589
        %v591 = vmul.f32 %v512, 1.442695
        %v592 = vpow.pop %v591
        %v593 = vmul.f32 %v513, 1.442695
        %v594 = vpow.pop %v593
        %v595 = vmul.f32 %v514, 1.442695
        %v596 = vpow.pop %v595
        %v597 = vmul.f32 %v515, 1.442695
        %v598 = vpow.pop %v597
        %v599 = vmul.f32 %v516, 1.442695
        %v600 = vpow.pop %v599
        %v601 = vmul.f32 %v517, 1.442695
        %v602 = vpow.pop %v601
        %v603 = vmul.f32 %v518, 1.442695
        %v604 = vpow.pop %v603
        %v605 = vmul.f32 %v519, 1.442695
        %v606 = vpow.pop %v605
        %v607 = vmul.f32 %v520, 1.442695
        %v608 = vpow.pop %v607
        %v609 = vmul.f32 %v521, 1.442695
        %v610 = vpow.pop %v609
        %v611 = vmul.f32 %v522, 1.442695
        %v612 = vpow.pop %v611
        %v613 = vmul.f32 %v523, 1.442695
        %v614 = vpow.pop %v613
        %v615 = vmul.f32 %v524, 1.442695
        %v616 = vpow.pop %v615
        %v617 = vmul.f32 %v525, 1.442695
        %v618 = vpow.pop %v617
        %v619 = vmul.f32 %v526, 1.442695
        %v620 = vpow.pop %v619
        %v621 = vmul.f32 %v527, 1.442695
        %v622 = vpow.pop %v621
        %v623 = vmul.f32 %v528, 1.442695
        %v624 = vpow.pop %v623
        %v625 = vmul.f32 %v529, 1.442695
        %v626 = vpow.pop %v625
        %v627 = vmul.f32 %v530, 1.442695
        %v628 = vpow.pop %v627
        %v629 = vmul.f32 %v531, 1.442695
        %v630 = vpow.pop %v629
        %v631 = vmul.f32 %v532, 1.442695
        %v632 = vpow.pop %v631
        %v633 = vmul.f32 %v533, 1.442695
        %v634 = vpow.pop %v633
        %v635 = vmul.f32 %v534, 1.442695
        %v636 = vpow.pop %v635
        %v637 = vmul.f32 %v535, 1.442695
        %v638 = vpow.pop %v637
        %v639 = vmul.f32 %v536, 1.442695
        %v640 = vpow.pop %v639
        %v641 = vmul.f32 %v537, 1.442695
        %v642 = vpow.pop %v641
        %v643 = vmul.f32 %v538, 1.442695
        %v644 = vpow.pop %v643
        %v645 = vmul.f32 %v539, 1.442695
        %v646 = vpow.pop %v645
        %v647 = vmul.f32 %v540, 1.442695
        %v648 = vpow.pop %v647
        %v649 = vmul.f32 %v541, 1.442695
        %v650 = vpow.pop %v649
        %v651 = vmul.f32 %v542, 1.442695
        %v652 = vpow.pop %v651
        %v653 = vmul.f32 %v543, 1.442695
        %v654 = vpow.pop %v653
        %v655 = vmul.f32 %v544, 1.442695
        %v656 = vpow.pop %v655
        %v657 = vmul.f32 %v545, 1.442695
        %v658 = vpow.pop %v657
        %v659 = vmul.f32 %v546, 1.442695
        %v660 = vpow.pop %v659
        %v661 = vmul.f32 %v547, 1.442695
        %v662 = vpow.pop %v661
        %v663 = vmul.f32 %v548, 1.442695
        %v664 = vpow.pop %v663
        %v665 = vmul.f32 %v549, 1.442695
        %v666 = vpow.pop %v665
        %v667 = vmul.f32 %v550, 1.442695
        %v668 = vpow.pop %v667
        %v669 = vmul.f32 %v551, 1.442695
        %v670 = vpow.pop %v669
        %v671 = vmul.f32 %v552, 1.442695
        %v672 = vpow.pop %v671
        %v673 = vmul.f32 %v553, 1.442695
        %v674 = vpow.pop %v673
        %v675 = vmul.f32 %v554, 1.442695
        %v676 = vpow.pop %v675
        %v677 = vmul.f32 %v555, 1.442695
        %v678 = vpow.pop %v677
        %v679 = vmul.f32 %v556, 1.442695
        %v680 = vpow.pop %v679
        %v681 = vmul.f32 %v557, 1.442695
        %v682 = vpow.pop %v681
        %v683 = vmul.f32 %v558, 1.442695
        %v684 = vpow.pop %v683
        %v685 = vmul.f32 %v559, 1.442695
        %v686 = vpow.pop %v685
        %v687 = vmul.f32 %v560, 1.442695
        %v688 = vpow.pop %v687
        %v689 = vld [vmem:[%s309] sm:$0xf]
        %v690 = vpack.c.bf16 %v564, %v562
        %v691 = vpack.c.bf16 %v568, %v566
        %v692 = vpack.c.bf16 %v572, %v570
        %v693 = vpack.c.bf16 %v576, %v574
        %v694 = vpack.c.bf16 %v580, %v578
        %v695 = vpack.c.bf16 %v584, %v582
        %v696 = vpack.c.bf16 %v588, %v586
        %v697 = vpack.c.bf16 %v592, %v590
        %v698 = vpack.c.bf16 %v596, %v594
        %v699 = vpack.c.bf16 %v600, %v598
        %v700 = vpack.c.bf16 %v604, %v602
        %v701 = vpack.c.bf16 %v608, %v606
        %v702 = vpack.c.bf16 %v612, %v610
        %v703 = vpack.c.bf16 %v616, %v614
        %v704 = vpack.c.bf16 %v620, %v618
        %v705 = vpack.c.bf16 %v624, %v622
        %v706 = vpack.c.bf16 %v628, %v626
        %v707 = vpack.c.bf16 %v632, %v630
        %v708 = vpack.c.bf16 %v636, %v634
        %v709 = vpack.c.bf16 %v640, %v638
        %v710 = vpack.c.bf16 %v644, %v642
        %v711 = vpack.c.bf16 %v648, %v646
        %v712 = vpack.c.bf16 %v652, %v650
        %v713 = vpack.c.bf16 %v656, %v654
        %v714 = vpack.c.bf16 %v660, %v658
        %v715 = vpack.c.bf16 %v664, %v662
        %v716 = vpack.c.bf16 %v668, %v666
        %v717 = vpack.c.bf16 %v672, %v670
        %v718 = vpack.c.bf16 %v676, %v674
        %v719 = vpack.c.bf16 %v680, %v678
        %v720 = vpack.c.bf16 %v684, %v682
        %v721 = vpack.c.bf16 %v688, %v686
        %v724 = vunpack.c.l.s4 1966171168
        %v725 = vunpack.c.0.s8 %v724
        %v726 = vlaneseq
        %v727 = vshrl.u32 %v726, 7
        %v728 = vsub.s32 %v725, %v727
        %v729 = vrot.slane %v689, %v728
        %v730 = vcombine.high %v729, %v729
        %v732 = vunpack.c.l.s4 1966171168
        %v733 = vunpack.c.0.s8 %v732
        %v734 = vlaneseq
        %v735 = vshrl.u32 %v734, 7
        %v736 = vsub.s32 %v733, %v735
        %v737 = vrot.slane %v729, %v736
        %v739 = vunpack.c.l.s4 1966171168
        %v740 = vunpack.c.0.s8 %v739
        %v741 = vlaneseq
        %v742 = vshrl.u32 %v741, 7
        %v743 = vsub.s32 %v740, %v742
        %v744 = vrot.slane %v730, %v743
        %v745 = vcombine.high %v737, %v737
        %v746 = vcombine.high %v744, %v744
        %751 = vmatprep.subr.bf16.mxu0 0
        %752 = vmatpush1.bf16.msra.mxu0 %v690
        %753 = vmatprep.subr.bf16.mxu0 0
        %754 = vmatpush1.bf16.msra.mxu0 %v691
        %755 = vmatprep.subr.bf16.mxu0 0
        %756 = vmatpush1.bf16.msra.mxu0 %v692
        %757 = vmatprep.subr.bf16.mxu0 0
        %758 = vmatpush1.bf16.msra.mxu0 %v693
        %759 = vmatprep.subr.bf16.mxu0 0
        %760 = vmatpush1.bf16.msra.mxu0 %v694
        %761 = vmatprep.subr.bf16.mxu0 0
        %762 = vmatpush1.bf16.msra.mxu0 %v695
        %763 = vmatprep.subr.bf16.mxu0 0
        %764 = vmatpush1.bf16.msra.mxu0 %v696
        %765 = vmatprep.subr.bf16.mxu0 0
        %766 = vmatpush1.bf16.msra.mxu0 %v697
        %767 = vmatprep.subr.bf16.mxu0 0
        %768 = vmatpush1.bf16.msra.mxu0 %v698
        %769 = vmatprep.subr.bf16.mxu0 0
        %770 = vmatpush1.bf16.msra.mxu0 %v699
        %771 = vmatprep.subr.bf16.mxu0 0
        %772 = vmatpush1.bf16.msra.mxu0 %v700
        %773 = vmatprep.subr.bf16.mxu0 0
        %774 = vmatpush1.bf16.msra.mxu0 %v701
        %775 = vmatprep.subr.bf16.mxu0 0
        %776 = vmatpush1.bf16.msra.mxu0 %v702
        %777 = vmatprep.subr.bf16.mxu0 0
        %778 = vmatpush1.bf16.msra.mxu0 %v703
        %779 = vmatprep.subr.bf16.mxu0 0
        %780 = vmatpush1.bf16.msra.mxu0 %v704
        %781 = vmatprep.subr.bf16.mxu0 0
        %782 = vmatpush1.bf16.msra.mxu0 %v705
        %783 = vmatprep.mubr.bf16.mxu0 %v744
        %784 = vmatmul.mubr.bf16.gmra.mrb[0].mxu0 %v737
        %v785 = vpop.f32.mrb[0].mxu0
        %v786 = vadd.f32 0.0, %v785
        %v787 = vpop.f32.mrb[0].mxu0
        %v788 = vpop.f32.mrb[0].mxu0
        %v789 = vpop.f32.mrb[0].mxu0
        %790 = vdwg.mxu0
        %791 = vmatprep.subr.bf16.mxu0 0
        %792 = vmatpush1.bf16.msra.mxu0 %v706
        %793 = vmatprep.subr.bf16.mxu0 0
        %794 = vmatpush1.bf16.msra.mxu0 %v707
        %795 = vmatprep.subr.bf16.mxu0 0
        %796 = vmatpush1.bf16.msra.mxu0 %v708
        %797 = vmatprep.subr.bf16.mxu0 0
        %798 = vmatpush1.bf16.msra.mxu0 %v709
        %799 = vmatprep.subr.bf16.mxu0 0
        %800 = vmatpush1.bf16.msra.mxu0 %v710
        %801 = vmatprep.subr.bf16.mxu0 0
        %802 = vmatpush1.bf16.msra.mxu0 %v711
        %803 = vmatprep.subr.bf16.mxu0 0
        %804 = vmatpush1.bf16.msra.mxu0 %v712
        %805 = vmatprep.subr.bf16.mxu0 0
        %806 = vmatpush1.bf16.msra.mxu0 %v713
        %807 = vmatprep.subr.bf16.mxu0 0
        %808 = vmatpush1.bf16.msra.mxu0 %v714
        %809 = vmatprep.subr.bf16.mxu0 0
        %810 = vmatpush1.bf16.msra.mxu0 %v715
        %811 = vmatprep.subr.bf16.mxu0 0
        %812 = vmatpush1.bf16.msra.mxu0 %v716
        %813 = vmatprep.subr.bf16.mxu0 0
        %814 = vmatpush1.bf16.msra.mxu0 %v717
        %815 = vmatprep.subr.bf16.mxu0 0
        %816 = vmatpush1.bf16.msra.mxu0 %v718
        %817 = vmatprep.subr.bf16.mxu0 0
        %818 = vmatpush1.bf16.msra.mxu0 %v719
        %819 = vmatprep.subr.bf16.mxu0 0
        %820 = vmatpush1.bf16.msra.mxu0 %v720
        %821 = vmatprep.subr.bf16.mxu0 0
        %822 = vmatpush1.bf16.msra.mxu0 %v721
        %823 = vmatprep.mubr.bf16.mxu0 %v746
        %824 = vmatmul.mubr.bf16.gmra.mrb[0].mxu0 %v745
        %v825 = vpop.f32.mrb[0].mxu0
        %v826 = vadd.f32 %v786, %v825
        %v827 = vpop.f32.mrb[0].mxu0
        %v828 = vpop.f32.mrb[0].mxu0
        %v829 = vpop.f32.mrb[0].mxu0
        %830 = vdwg.mxu0
        %v831 = vld [vmem:[%s291] sm:$0x1]
        %v832 = vadd.f32 %v831, %v826
        %833 = vst [vmem:[%s291] sm:$0x1] %v832
        // Predicated region
        $region45: #{tpu_custom_call.1} parent=39 // pred_check
          %p834 = pneg %p317
        $region46: #{tpu_custom_call.1} parent=39 // pred_check_branch
          %836 = sbr.rel (%p834) target = $region48
        $region47: #{tpu_custom_call.1} parent=39 // pred_region
          %v837 = vld [vmem:[%s291] sm:$0x1]
          %s838 = sld [smem:[#allocation2]]
          %v839 = vstv %s838
          %v840 = vadd.f32 %v837, %v839
          %841 = vst [vmem:[%s291] sm:$0x1] %v840
        $region48: #{tpu_custom_call.1} parent=39 // pred_fallthru
          _
        %s842 = sand.u32 %s175, 1
        %s843 = scalar_lea.sflag [#allocation4], %s842
        %s844 = sand.u32 %s175, 1
        %s845 = scalar_lea.vmem [#allocation3], %s844
        // Predicated region
        $region49: #{tpu_custom_call.1} parent=39 // pred_check
          %p846 = pneg %p185
        $region50: #{tpu_custom_call.1} parent=39 // pred_check_branch
          %848 = sbr.rel (%p846) target = $region52
        $region51: #{tpu_custom_call.1} parent=39 // pred_region
          %s850 = ssub.s32 16, 16
          %851 = vsyncadd %s843, %s850
          %s852 = sadd.s32 %s26, %s25
          %s853 = smul.addr %s852, 16
          %s854 = scalar_lea.hbm %s5, %s853
          %s856 = sshll.u32 %s845, 4
          %s857 = int_to_ptr.vmem [resolvable:$true] %s856
          %859 = dma.vmem_to_hbm [thread:$0]  %s857, 16, %s854, %s843
        $region52: #{tpu_custom_call.1} parent=39 // pred_fallthru
          _
      $region40: #{tpu_custom_call.1} parent=5 // pred_fallthru
        _
      %p860 = scmp.le.s32.totalorder 2, %s15
      // Predicated region
      $region53: #{tpu_custom_call.1} parent=5 // pred_check
        %p861 = pneg %p860
      $region54: #{tpu_custom_call.1} parent=5 // pred_check_branch
        %863 = sbr.rel (%p861) target = $region56
      $region55: #{tpu_custom_call.1} parent=5 // pred_region
        %s864 = ssub.s32 %s15, 2
        // Predicated region
        $region57: #{tpu_custom_call.1} parent=55 // pred_check
          %p865 = pneg %p191
        $region58: #{tpu_custom_call.1} parent=55 // pred_check_branch
          %867 = sbr.rel (%p865) target = $region60
        $region59: #{tpu_custom_call.1} parent=55 // pred_region
          %s868 = sand.u32 %s176, 1
          %s869 = scalar_lea.sflag [#allocation4], %s868
          %s870 = sand.u32 %s176, 1
          %s871 = scalar_lea.vmem [#allocation3], %s870
          %872 = dma.done %s869, 16
        $region60: #{tpu_custom_call.1} parent=55 // pred_fallthru
          _
      $region56: #{tpu_custom_call.1} parent=5 // pred_fallthru
        _
    $region6: #{tpu_custom_call.1} parent=1 // loop_footer
      %s19 = sadd.s32 1, %s15
    $region7: #{tpu_custom_call.1} parent=1 // loop_footer_branch
      %14 = sbr.rel target = $region3
    $region8: #{tpu_custom_call.1} parent=1 // loop_exit
      _
    %873 = vsyncpa [#allocation4], 1
    %s874 = scalar_lea.sflag [#allocation4], 1
    %875 = vsyncpa %s874, 1

</llo_original>
